<compile_context>
chip_gen: v7x
topology: tpu7x:2x2x1
jax: 0.10.0
libtpu: 0.0.40
codegen_flags: <defaults>
</compile_context>

<pallas_src>
import jax
import jax.numpy as jnp
from jax import lax
from jax.experimental import pallas as pl
from jax.experimental.pallas import tpu as pltpu

_INV_SQRT2 = 0.7071067811865476  # 1 / sqrt(2)


def _embedfc_kernel(x_ref, w1_ref, b1_ref, w2_ref, b2_ref, o_ref):
    # Layer 1: MXU matmul in the operands' native dtype, f32 accumulation.
    h = jnp.dot(x_ref[...], w1_ref[...], preferred_element_type=jnp.float32)
    h = h + b1_ref[...].astype(jnp.float32)

    # Exact (erf) GELU -- PyTorch nn.GELU default. Multiply by a precomputed
    # 1/sqrt(2) (VPU mul) instead of a vector divide.
    h = 0.5 * h * (1.0 + lax.erf(h * _INV_SQRT2))

    # Layer 2: cast the activation to the weights' dtype (no-op for f32) so the
    # MXU runs in that dtype, f32 accumulation, add bias, lane-dense store.
    out = jnp.dot(h.astype(w2_ref.dtype), w2_ref[...],
                  preferred_element_type=jnp.float32)
    out = out + b2_ref[...].astype(jnp.float32)
    o_ref[...] = out.astype(o_ref.dtype)


def _round_up(n, m):
    return ((n + m - 1) // m) * m


def _vmem_bytes(tile_b, input_dim, emb_p, x_bytes, w_bytes, out_bytes):
    """Rough per-step VMEM footprint estimate (bytes)."""
    x_buf = 2 * tile_b * input_dim * x_bytes               # double-buffered x tile
    o_buf = 2 * tile_b * emb_p * out_bytes                 # double-buffered out tile
    w_res = (input_dim * emb_p + emb_p * emb_p + 2 * emb_p) * w_bytes  # single-buffered
    h_scr = 2 * tile_b * emb_p * 4                         # f32 h + GELU temporaries
    return x_buf + o_buf + w_res + h_scr


def embed_fc(x, w1, b1, w2, b2, input_dim, *, tile_b=512, mxu_dtype=None):
    """Forward pass of EmbedFC.

    x : any shape whose elements flatten to (-1, input_dim)
    w1: [input_dim, emb_dim], b1: [emb_dim]
    w2: [emb_dim, emb_dim],   b2: [emb_dim]
    mxu_dtype: optional matmul-operand dtype (e.g. jnp.bfloat16 on v6e/v7x).
        Accumulation stays f32; the output keeps x.dtype. Note bf16 will not
        bit-match the f32 PyTorch reference.
    """
    out_dtype = x.dtype
    x2d = x.reshape(-1, input_dim)          # the .view(-1, input_dim)
    B = x2d.shape[0]
    emb_dim = w1.shape[1]

    if mxu_dtype is not None:
        x2d = x2d.astype(mxu_dtype)
        w1 = w1.astype(mxu_dtype)
        w2 = w2.astype(mxu_dtype)

    # ---- Lane-dense padding of the hidden/output feature dim ----
    # 128 lanes for f32; 256 for sub-32-bit operands (256x256 MXU on v6e/v7x).
    lane = 256 if (mxu_dtype is not None
                   and jnp.dtype(mxu_dtype).itemsize < 4) else 128
    emb_p = _round_up(emb_dim, lane)
    if emb_p != emb_dim:
        pad_e = emb_p - emb_dim
        w1 = jnp.pad(w1, ((0, 0), (0, pad_e)))
        b1 = jnp.pad(b1, ((0, pad_e),))
        w2 = jnp.pad(w2, ((0, pad_e), (0, pad_e)))
        b2 = jnp.pad(b2, ((0, pad_e),))
    b1_2d = b1.reshape(1, emb_p)
    b2_2d = b2.reshape(1, emb_p)

    # ---- Batch tiling: ragged edge block is clipped by Pallas (no jnp.pad) ----
    tile_b = min(tile_b, B)
    if B > 8:
        # >= 2 grid steps so the "parallel" axis can split across v7x's two
        # TensorCores; balanced tiles; 8-row (sublane) aligned.
        n_tiles = max(2, pl.cdiv(B, tile_b))
        tile_b = _round_up(pl.cdiv(B, n_tiles), 8)

    x_bytes = x2d.dtype.itemsize
    w_bytes = w1.dtype.itemsize
    out_bytes = jnp.dtype(out_dtype).itemsize

    # Shrink the batch tile until the footprint fits a conservative budget
    # (keeps headroom inside v7x's 64 MiB VMEM).
    vmem_budget = 40 << 20
    while tile_b > 8 and _vmem_bytes(tile_b, input_dim, emb_p,
                                     x_bytes, w_bytes, out_bytes) > vmem_budget:
        tile_b = max(8, _round_up(tile_b // 2, 8))
    # TODO(synk): if emb_dim ever grows so large that resident W2 alone blows
    # the budget, add a second "parallel" grid axis tiling W2 columns.

    grid = (pl.cdiv(B, tile_b),)

    footprint = _vmem_bytes(tile_b, input_dim, emb_p,
                            x_bytes, w_bytes, out_bytes)
    # Raise the scoped-VMEM cap above v5e's 16 MiB default; stay below v7x's
    # 64 MiB physical VMEM.
    vmem_limit = int(min(64 << 20, max(32 << 20, int(footprint * 1.5))))

    cost = pl.CostEstimate(
        flops=2 * B * input_dim * emb_p + 2 * B * emb_p * emb_p,
        transcendentals=B * emb_p,
        bytes_accessed=(x2d.size * x_bytes
                        + (w1.size + w2.size) * w_bytes
                        + (b1.size + b2.size) * b1.dtype.itemsize
                        + B * emb_p * out_bytes),
    )

    resident = pl.Buffered(1)  # constant index_map => single-buffer the weights

    out = pl.pallas_call(
        _embedfc_kernel,
        out_shape=jax.ShapeDtypeStruct((B, emb_p), out_dtype),
        grid_spec=pltpu.PrefetchScalarGridSpec(
            num_scalar_prefetch=0,
            grid=grid,
            in_specs=[
                # x tile: pipelined / double-buffered across grid steps.
                pl.BlockSpec((tile_b, input_dim), lambda i: (i, 0)),
                # weights & biases: VMEM-resident, fetched once, single-buffered.
                pl.BlockSpec((input_dim, emb_p), lambda i: (0, 0),
                             pipeline_mode=resident),
                pl.BlockSpec((1, emb_p), lambda i: (0, 0),
                             pipeline_mode=resident),
                pl.BlockSpec((emb_p, emb_p), lambda i: (0, 0),
                             pipeline_mode=resident),
                pl.BlockSpec((1, emb_p), lambda i: (0, 0),
                             pipeline_mode=resident),
            ],
            out_specs=pl.BlockSpec((tile_b, emb_p), lambda i: (i, 0)),
        ),
        compiler_params=pltpu.CompilerParams(
            dimension_semantics=("parallel",),
            vmem_limit_bytes=vmem_limit,
        ),
        cost_estimate=cost,
    )(x2d, w1, b1_2d, w2, b2_2d)

    # Only pay a column-slice pass when lane padding was actually needed.
    return out if emb_p == emb_dim else out[:, :emb_dim]


def _init_params(key, input_dim, emb_dim):
    """Deterministic PyTorch-style (uniform +/- 1/sqrt(fan_in)) init."""
    k1, k2, k3, k4 = jax.random.split(key, 4)
    lim1 = 1.0 / jnp.sqrt(input_dim)
    lim2 = 1.0 / jnp.sqrt(emb_dim)
    # Stored as [in, out] (transpose of torch's [out, in]).
    w1 = jax.random.uniform(k1, (input_dim, emb_dim), jnp.float32, -lim1, lim1)
    b1 = jax.random.uniform(k2, (emb_dim,), jnp.float32, -lim1, lim1)
    w2 = jax.random.uniform(k3, (emb_dim, emb_dim), jnp.float32, -lim2, lim2)
    b2 = jax.random.uniform(k4, (emb_dim,), jnp.float32, -lim2, lim2)
    return w1, b1, w2, b2


if __name__ == "__main__":
    input_dim = 16
    emb_dim = 32

    key = jax.random.PRNGKey(0)
    kx, kp = jax.random.split(key)

    # Example input: [batch=2, channels=4, features=16] -> view(-1, 16) -> [8, 16]
    x = jax.random.normal(kx, (2, 4, input_dim), dtype=jnp.float32)
    w1, b1, w2, b2 = _init_params(kp, input_dim, emb_dim)

    # Pure-JAX reference (same exact erf-GELU semantics as PyTorch nn.GELU).
    x2d = x.reshape(-1, input_dim)
    h = x2d @ w1 + b1
    h = 0.5 * h * (1.0 + lax.erf(h * _INV_SQRT2))
    ref = h @ w2 + b2

    # f32 path: faithful to the PyTorch module.
    out = jax.block_until_ready(embed_fc(x, w1, b1, w2, b2, input_dim))
    assert out.shape == (8, emb_dim)
    assert jnp.allclose(out, ref, atol=1e-5, rtol=1e-5)

    # bf16-MXU path (the v6e/v7x fast path): looser tolerance, output stays f32.
    out_bf16 = jax.block_until_ready(
        embed_fc(x, w1, b1, w2, b2, input_dim, mxu_dtype=jnp.bfloat16))
    assert out_bf16.shape == (8, emb_dim)
    assert out_bf16.dtype == jnp.float32
    assert jnp.allclose(out_bf16, ref, atol=5e-2, rtol=5e-2)

    print("KERNEL_OK")
</pallas_src>

<mosaic_0001>
module attributes {stable_mosaic.version = 11 : i64} {
  func.func @_embedfc_kernel(%arg0: i32, %arg1: memref<8x16xf32, #tpu.memory_space<vmem>>, %arg2: memref<16x128xf32, #tpu.memory_space<vmem>>, %arg3: memref<1x128xf32, #tpu.memory_space<vmem>>, %arg4: memref<128x128xf32, #tpu.memory_space<vmem>>, %arg5: memref<1x128xf32, #tpu.memory_space<vmem>>, %arg6: memref<8x128xf32, #tpu.memory_space<vmem>>) attributes {dimension_semantics = [#tpu.dimension_semantics<parallel>], iteration_bounds = array<i64: 1>, scalar_prefetch = 0 : i64, scratch_operands = 0 : i64, tpu.core_type = #tpu.core_type<tc>, window_params = [{transform_indices = @transform_0, window_bounds = array<i64: 8, 16>}, {pipeline_mode = #tpu.pipeline_mode<synchronous>, transform_indices = @transform_1, window_bounds = array<i64: 16, 128>}, {pipeline_mode = #tpu.pipeline_mode<synchronous>, transform_indices = @transform_2, window_bounds = array<i64: 1, 128>}, {pipeline_mode = #tpu.pipeline_mode<synchronous>, transform_indices = @transform_3, window_bounds = array<i64: 128, 128>}, {pipeline_mode = #tpu.pipeline_mode<synchronous>, transform_indices = @transform_4, window_bounds = array<i64: 1, 128>}, {transform_indices = @transform_5, window_bounds = array<i64: 8, 128>}]} {
    %c0 = arith.constant 0 : index
    %c0_0 = arith.constant 0 : index
    %0 = vector.load %arg1[%c0, %c0_0] : memref<8x16xf32, #tpu.memory_space<vmem>>, vector<8x16xf32>
    %c0_1 = arith.constant 0 : index
    %c0_2 = arith.constant 0 : index
    %1 = vector.load %arg2[%c0_1, %c0_2] : memref<16x128xf32, #tpu.memory_space<vmem>>, vector<16x128xf32>
    %cst = arith.constant dense<0.000000e+00> : vector<8x128xf32>
    %2 = tpu.matmul %0, %1, %cst {dimension_numbers = #tpu.dot_dimension_numbers<[1], [0], [0], [1], [0, 0, 1, 1], [], []>} : vector<8x16xf32>, vector<16x128xf32>, vector<8x128xf32> -> vector<8x128xf32>
    %c0_3 = arith.constant 0 : index
    %c0_4 = arith.constant 0 : index
    %3 = vector.load %arg3[%c0_3, %c0_4] : memref<1x128xf32, #tpu.memory_space<vmem>>, vector<1x128xf32>
    %4 = vector.broadcast %3 : vector<1x128xf32> to vector<8x128xf32>
    %5 = arith.addf %2, %4 : vector<8x128xf32>
    %cst_5 = arith.constant 5.000000e-01 : f32
    %6 = vector.broadcast %cst_5 : f32 to vector<8x128xf32>
    %7 = arith.mulf %6, %5 : vector<8x128xf32>
    %cst_6 = arith.constant 0.707106769 : f32
    %8 = vector.broadcast %cst_6 : f32 to vector<8x128xf32>
    %9 = arith.mulf %5, %8 : vector<8x128xf32>
    %10 = math.erf %9 : vector<8x128xf32>
    %cst_7 = arith.constant 1.000000e+00 : f32
    %11 = vector.broadcast %cst_7 : f32 to vector<8x128xf32>
    %12 = arith.addf %11, %10 : vector<8x128xf32>
    %13 = arith.mulf %7, %12 : vector<8x128xf32>
    %c0_8 = arith.constant 0 : index
    %c0_9 = arith.constant 0 : index
    %14 = vector.load %arg4[%c0_8, %c0_9] : memref<128x128xf32, #tpu.memory_space<vmem>>, vector<128x128xf32>
    %cst_10 = arith.constant dense<0.000000e+00> : vector<8x128xf32>
    %15 = tpu.matmul %13, %14, %cst_10 {dimension_numbers = #tpu.dot_dimension_numbers<[1], [0], [0], [1], [0, 0, 1, 1], [], []>} : vector<8x128xf32>, vector<128x128xf32>, vector<8x128xf32> -> vector<8x128xf32>
    %c0_11 = arith.constant 0 : index
    %c0_12 = arith.constant 0 : index
    %16 = vector.load %arg5[%c0_11, %c0_12] : memref<1x128xf32, #tpu.memory_space<vmem>>, vector<1x128xf32>
    %17 = vector.broadcast %16 : vector<1x128xf32> to vector<8x128xf32>
    %18 = arith.addf %15, %17 : vector<8x128xf32>
    %c0_13 = arith.constant 0 : index
    %c0_14 = arith.constant 0 : index
    %19 = vector.load %arg6[%c0_13, %c0_14] : memref<8x128xf32, #tpu.memory_space<vmem>>, vector<8x128xf32>
    tpu.vector_store %arg6[%c0_13, %c0_14], %18 {strides = array<i32>} : memref<8x128xf32, #tpu.memory_space<vmem>>, vector<8x128xf32>,
    return
  }
  func.func @transform_0(%arg0: i32) -> (i32, i32) {
    %c0_i32 = arith.constant 0 : i32
    %c0_i32_0 = arith.constant 0 : i32
    return %arg0, %c0_i32 : i32, i32
  }
  func.func @transform_1(%arg0: i32) -> (i32, i32) {
    %c0_i32 = arith.constant 0 : i32
    %c0_i32_0 = arith.constant 0 : i32
    %c0_i32_1 = arith.constant 0 : i32
    return %c0_i32, %c0_i32_0 : i32, i32
  }
  func.func @transform_2(%arg0: i32) -> (i32, i32) {
    %c0_i32 = arith.constant 0 : i32
    %c0_i32_0 = arith.constant 0 : i32
    %c0_i32_1 = arith.constant 0 : i32
    return %c0_i32, %c0_i32_0 : i32, i32
  }
  func.func @transform_3(%arg0: i32) -> (i32, i32) {
    %c0_i32 = arith.constant 0 : i32
    %c0_i32_0 = arith.constant 0 : i32
    %c0_i32_1 = arith.constant 0 : i32
    return %c0_i32, %c0_i32_0 : i32, i32
  }
  func.func @transform_4(%arg0: i32) -> (i32, i32) {
    %c0_i32 = arith.constant 0 : i32
    %c0_i32_0 = arith.constant 0 : i32
    %c0_i32_1 = arith.constant 0 : i32
    return %c0_i32, %c0_i32_0 : i32, i32
  }
  func.func @transform_5(%arg0: i32) -> (i32, i32) {
    %c0_i32 = arith.constant 0 : i32
    %c0_i32_0 = arith.constant 0 : i32
    return %arg0, %c0_i32 : i32, i32
  }
}

</mosaic_0001>

<llo_original>
// kernel: tpu_custom_call.1
$region0: #{tpu_custom_call.1}
  #allocation0 [shape = 'u32[]', space=smem, size = 0x4, offset = 0x4, fixed_abs, tag = 'smem constant byte address 0x4 - core index']
  #allocation1 [shape = 'u32[144,128]{1,0:T(1,128)}', space=vmem, size = 0x12000, scoped, tag = 'internal scratch']
  %s0 = inlined_call_operand.hbm [shape: f32[8,16], index: 0, kind: input, shape index: {}]
  %s1 = inlined_call_operand.hbm [shape: f32[16,128], index: 1, kind: input, shape index: {}]
  %s2 = inlined_call_operand.vmem [shape: f32[1,128], index: 2, kind: input, shape index: {}]
  %s3 = inlined_call_operand.hbm [shape: f32[128,128], index: 3, kind: input, shape index: {}]
  %s4 = inlined_call_operand.vmem [shape: f32[1,128], index: 4, kind: input, shape index: {}]
  %s5 = inlined_call_operand.hbm [shape: f32[8,128], index: 5, kind: output, shape index: {}]
  %s6 = sld [smem:[#allocation0]]
  $region42: #{tpu_custom_call.1} parent=0
    _
  %s8 = ssub.s32 1, %s6
  %s9 = scalar_select 0, %s8, %s6
  $region1: #{tpu_custom_call.1} parent=0
    #allocation2 [shape = 'u8[4096]{0}', space=vmem, size = 0x1000, scoped, tag = 'input window, operand 0, single buffered']
    #allocation3 [shape = 's32[1]{0}', space=sflag, size = 0x4, scoped, tag = 'scoped memory for tpu_custom_call.1']
    #allocation4 [shape = 's32[1]{0}', space=sflag, size = 0x4, scoped, tag = 'scoped memory for tpu_custom_call.1']
    #allocation5 [shape = 'u8[8192]{0}', space=vmem, size = 0x2000, scoped, tag = 'input window, operand 1, single buffered']
    #allocation6 [shape = 's32[1]{0}', space=sflag, size = 0x4, scoped, tag = 'scoped memory for tpu_custom_call.1']
    #allocation7 [shape = 'u8[65536]{0}', space=vmem, size = 0x10000, scoped, tag = 'input window, operand 3, single buffered']
    #allocation8 [shape = 'u8[4096]{0}', space=vmem, size = 0x1000, scoped, tag = 'output window, operand 0, single buffered']
    %10 = vsyncpa [#allocation3], 0
    %11 = vsyncpa [#allocation6], 0
    %12 = vsyncpa [#allocation4], 0
    // Predicated region
    $region2: #{tpu_custom_call.1} parent=1 // pred_check
      _
    $region3: #{tpu_custom_call.1} parent=1 // pred_check_branch
      %14 = sbr.rel (0) target = $region5
    $region4: #{tpu_custom_call.1} parent=1 // pred_region
      %s16 = ssub.s32 128, 128
      %17 = vsyncadd [#allocation3], %s16
      %s19 = sshll.u32 [#allocation2], 4
      %s20 = int_to_ptr.vmem [resolvable:$true] %s19
      %22 = dma.hbm_to_vmem [thread:$0]  %s0, 128, %s20, [#allocation3]
    $region5: #{tpu_custom_call.1} parent=1 // pred_fallthru
      _
    // Predicated region
    $region6: #{tpu_custom_call.1} parent=1 // pred_check
      _
    $region7: #{tpu_custom_call.1} parent=1 // pred_check_branch
      %24 = sbr.rel (0) target = $region9
    $region8: #{tpu_custom_call.1} parent=1 // pred_region
      %s26 = ssub.s32 256, 256
      %27 = vsyncadd [#allocation6], %s26
      %s28 = sshll.u32 [#allocation5], 4
      %s29 = int_to_ptr.vmem [resolvable:$true] %s28
      %34 = dma.hbm_to_vmem [thread:$0]  %s1, 256, %s29, [#allocation6], 128, 128, 8
    $region9: #{tpu_custom_call.1} parent=1 // pred_fallthru
      _
    // Predicated region
    $region10: #{tpu_custom_call.1} parent=1 // pred_check
      _
    $region11: #{tpu_custom_call.1} parent=1 // pred_check_branch
      %36 = sbr.rel (0) target = $region13
    $region12: #{tpu_custom_call.1} parent=1 // pred_region
      _
    $region13: #{tpu_custom_call.1} parent=1 // pred_fallthru
      _
    // Predicated region
    $region14: #{tpu_custom_call.1} parent=1 // pred_check
      _
    $region15: #{tpu_custom_call.1} parent=1 // pred_check_branch
      %38 = sbr.rel (0) target = $region17
    $region16: #{tpu_custom_call.1} parent=1 // pred_region
      %s40 = ssub.s32 2048, 2048
      %41 = vsyncadd [#allocation6], %s40
      %s42 = sshll.u32 [#allocation7], 4
      %s43 = int_to_ptr.vmem [resolvable:$true] %s42
      %48 = dma.hbm_to_vmem [thread:$0]  %s3, 2048, %s43, [#allocation6], 128, 128, 8
    $region17: #{tpu_custom_call.1} parent=1 // pred_fallthru
      _
    // Predicated region
    $region18: #{tpu_custom_call.1} parent=1 // pred_check
      _
    $region19: #{tpu_custom_call.1} parent=1 // pred_check_branch
      %50 = sbr.rel (0) target = $region21
    $region20: #{tpu_custom_call.1} parent=1 // pred_region
      _
    $region21: #{tpu_custom_call.1} parent=1 // pred_fallthru
      _
    // Predicated region
    $region22: #{tpu_custom_call.1} parent=1 // pred_check
      _
    $region23: #{tpu_custom_call.1} parent=1 // pred_check_branch
      %52 = sbr.rel (0) target = $region25
    $region24: #{tpu_custom_call.1} parent=1 // pred_region
      %53 = dma.done [#allocation3], 128
    $region25: #{tpu_custom_call.1} parent=1 // pred_fallthru
      _
    // Predicated region
    $region26: #{tpu_custom_call.1} parent=1 // pred_check
      _
    $region27: #{tpu_custom_call.1} parent=1 // pred_check_branch
      %55 = sbr.rel (0) target = $region29
    $region28: #{tpu_custom_call.1} parent=1 // pred_region
      %56 = dma.done [#allocation6], 256
    $region29: #{tpu_custom_call.1} parent=1 // pred_fallthru
      _
    // Predicated region
    $region30: #{tpu_custom_call.1} parent=1 // pred_check
      _
    $region31: #{tpu_custom_call.1} parent=1 // pred_check_branch
      %58 = sbr.rel (0) target = $region33
    $region32: #{tpu_custom_call.1} parent=1 // pred_region
      %59 = dma.done [#allocation6], 2048
    $region33: #{tpu_custom_call.1} parent=1 // pred_fallthru
      _
    %v60 = vld [vmem:[#allocation2] sm:$0xff]
    %v61 = vld [vmem:[#allocation5] sm:$0xff]
    %v62 = vld [vmem:[#allocation5 + $0x8] sm:$0xff]
    %v63 = vld [vmem:[%s2] sm:$0x1]
    %v65 = vlaneseq
    %v66 = vshrl.u32 %v65, 7
    %v67 = vsub.s32 0, %v66
    %v68 = vrot.slane %v63, %v67
    %vm70 = vcmask 130048
    %v72 = vsel %vm70, %v60, 0
    %74 = vmatprep.subr.mxu0 0.0
    %75 = vmatpush1.msra.mxu0 %v61
    %76 = vmatprep.subr.mxu0 0.0
    %77 = vmatpush1.msra.mxu0 %v62
    %78 = vmatprep.subr.mxu0 0.0
    %79 = vmatpush1.msra.mxu0 0.0
    %80 = vmatprep.subr.mxu0 0.0
    %81 = vmatpush1.msra.mxu0 0.0
    %82 = vmatprep.subr.mxu0 0.0
    %83 = vmatpush1.msra.mxu0 0.0
    %84 = vmatprep.subr.mxu0 0.0
    %85 = vmatpush1.msra.mxu0 0.0
    %86 = vmatprep.subr.mxu0 0.0
    %87 = vmatpush1.msra.mxu0 0.0
    %88 = vmatprep.subr.mxu0 0.0
    %89 = vmatpush1.msra.mxu0 0.0
    %90 = vmatprep.subr.mxu0 0.0
    %91 = vmatpush1.msra.mxu0 0.0
    %92 = vmatprep.subr.mxu0 0.0
    %93 = vmatpush1.msra.mxu0 0.0
    %94 = vmatprep.subr.mxu0 0.0
    %95 = vmatpush1.msra.mxu0 0.0
    %96 = vmatprep.subr.mxu0 0.0
    %97 = vmatpush1.msra.mxu0 0.0
    %98 = vmatprep.subr.mxu0 0.0
    %99 = vmatpush1.msra.mxu0 0.0
    %100 = vmatprep.subr.mxu0 0.0
    %101 = vmatpush1.msra.mxu0 0.0
    %102 = vmatprep.subr.mxu0 0.0
    %103 = vmatpush1.msra.mxu0 0.0
    %104 = vmatprep.subr.mxu0 0.0
    %105 = vmatpush1.msra.mxu0 0.0
    %106 = vmatprep.subr.mxu0 0.0
    %107 = vmatpush1.msra.mxu0 0.0
    %108 = vmatprep.subr.mxu0 0.0
    %109 = vmatpush1.msra.mxu0 0.0
    %110 = vmatprep.subr.mxu0 0.0
    %111 = vmatpush1.msra.mxu0 0.0
    %112 = vmatprep.subr.mxu0 0.0
    %113 = vmatpush1.msra.mxu0 0.0
    %114 = vmatprep.subr.mxu0 0.0
    %115 = vmatpush1.msra.mxu0 0.0
    %116 = vmatprep.subr.mxu0 0.0
    %117 = vmatpush1.msra.mxu0 0.0
    %118 = vmatprep.subr.mxu0 0.0
    %119 = vmatpush1.msra.mxu0 0.0
    %120 = vmatprep.subr.mxu0 0.0
    %121 = vmatpush1.msra.mxu0 0.0
    %122 = vmatprep.subr.mxu0 0.0
    %123 = vmatpush1.msra.mxu0 0.0
    %124 = vmatprep.subr.mxu0 0.0
    %125 = vmatpush1.msra.mxu0 0.0
    %126 = vmatprep.subr.mxu0 0.0
    %127 = vmatpush1.msra.mxu0 0.0
    %128 = vmatprep.subr.mxu0 0.0
    %129 = vmatpush1.msra.mxu0 0.0
    %130 = vmatprep.subr.mxu0 0.0
    %131 = vmatpush1.msra.mxu0 0.0
    %132 = vmatprep.subr.mxu0 0.0
    %133 = vmatpush1.msra.mxu0 0.0
    %134 = vmatprep.subr.mxu0 0.0
    %135 = vmatpush1.msra.mxu0 0.0
    %136 = vmatprep.subr.mxu0 0.0
    %137 = vmatpush1.msra.mxu0 0.0
    %138 = vmatprep.mubr.f32.mxu0 0.0
    %139 = vmatmul.mubr.f32.gmra.mrb[0].mxu0 %v72
    %v140 = vpop.f32.mrb[0].mxu0
    %v141 = vadd.f32 %v68, %v140
    %v142 = vpop.f32.mrb[0].mxu0
    %143 = vdwg.mxu0
    %v144 = vmul.f32 %v141, 0.5
    %v145 = vmul.f32 %v141, 0.70710677
    %v146 = verf.f32.pop %v145
    %v147 = vadd.f32 %v146, 1.0
    %v148 = vmul.f32 %v144, %v147
    %v149 = vld [vmem:[#allocation7] sm:$0xff]
    %v150 = vld [vmem:[#allocation7 + $0x8] sm:$0xff]
    %v151 = vld [vmem:[#allocation7 + $0x10] sm:$0xff]
    %v152 = vld [vmem:[#allocation7 + $0x18] sm:$0xff]
    %v153 = vld [vmem:[#allocation7 + $0x20] sm:$0xff]
    %v154 = vld [vmem:[#allocation7 + $0x28] sm:$0xff]
    %v155 = vld [vmem:[#allocation7 + $0x30] sm:$0xff]
    %v156 = vld [vmem:[#allocation7 + $0x38] sm:$0xff]
    %v157 = vld [vmem:[#allocation7 + $0x40] sm:$0xff]
    %v158 = vld [vmem:[#allocation7 + $0x48] sm:$0xff]
    %v159 = vld [vmem:[#allocation7 + $0x50] sm:$0xff]
    %v160 = vld [vmem:[#allocation7 + $0x58] sm:$0xff]
    %v161 = vld [vmem:[#allocation7 + $0x60] sm:$0xff]
    %v162 = vld [vmem:[#allocation7 + $0x68] sm:$0xff]
    %v163 = vld [vmem:[#allocation7 + $0x70] sm:$0xff]
    %v164 = vld [vmem:[#allocation7 + $0x78] sm:$0xff]
    %v165 = vld [vmem:[%s4] sm:$0x1]
    %v167 = vlaneseq
    %v168 = vshrl.u32 %v167, 7
    %v169 = vsub.s32 0, %v168
    %v170 = vrot.slane %v165, %v169
    %172 = vmatprep.subr.mxu0 0.0
    %173 = vmatpush1.msra.mxu0 %v149
    %174 = vmatprep.subr.mxu0 0.0
    %175 = vmatpush1.msra.mxu0 %v150
    %176 = vmatprep.subr.mxu0 0.0
    %177 = vmatpush1.msra.mxu0 %v151
    %178 = vmatprep.subr.mxu0 0.0
    %179 = vmatpush1.msra.mxu0 %v152
    %180 = vmatprep.subr.mxu0 0.0
    %181 = vmatpush1.msra.mxu0 %v153
    %182 = vmatprep.subr.mxu0 0.0
    %183 = vmatpush1.msra.mxu0 %v154
    %184 = vmatprep.subr.mxu0 0.0
    %185 = vmatpush1.msra.mxu0 %v155
    %186 = vmatprep.subr.mxu0 0.0
    %187 = vmatpush1.msra.mxu0 %v156
    %188 = vmatprep.subr.mxu0 0.0
    %189 = vmatpush1.msra.mxu0 %v157
    %190 = vmatprep.subr.mxu0 0.0
    %191 = vmatpush1.msra.mxu0 %v158
    %192 = vmatprep.subr.mxu0 0.0
    %193 = vmatpush1.msra.mxu0 %v159
    %194 = vmatprep.subr.mxu0 0.0
    %195 = vmatpush1.msra.mxu0 %v160
    %196 = vmatprep.subr.mxu0 0.0
    %197 = vmatpush1.msra.mxu0 %v161
    %198 = vmatprep.subr.mxu0 0.0
    %199 = vmatpush1.msra.mxu0 %v162
    %200 = vmatprep.subr.mxu0 0.0
    %201 = vmatpush1.msra.mxu0 %v163
    %202 = vmatprep.subr.mxu0 0.0
    %203 = vmatpush1.msra.mxu0 %v164
    %204 = vmatprep.subr.mxu0 0.0
    %205 = vmatpush1.msra.mxu0 0.0
    %206 = vmatprep.subr.mxu0 0.0
    %207 = vmatpush1.msra.mxu0 0.0
    %208 = vmatprep.subr.mxu0 0.0
    %209 = vmatpush1.msra.mxu0 0.0
    %210 = vmatprep.subr.mxu0 0.0
    %211 = vmatpush1.msra.mxu0 0.0
    %212 = vmatprep.subr.mxu0 0.0
    %213 = vmatpush1.msra.mxu0 0.0
    %214 = vmatprep.subr.mxu0 0.0
    %215 = vmatpush1.msra.mxu0 0.0
    %216 = vmatprep.subr.mxu0 0.0
    %217 = vmatpush1.msra.mxu0 0.0
    %218 = vmatprep.subr.mxu0 0.0
    %219 = vmatpush1.msra.mxu0 0.0
    %220 = vmatprep.subr.mxu0 0.0
    %221 = vmatpush1.msra.mxu0 0.0
    %222 = vmatprep.subr.mxu0 0.0
    %223 = vmatpush1.msra.mxu0 0.0
    %224 = vmatprep.subr.mxu0 0.0
    %225 = vmatpush1.msra.mxu0 0.0
    %226 = vmatprep.subr.mxu0 0.0
    %227 = vmatpush1.msra.mxu0 0.0
    %228 = vmatprep.subr.mxu0 0.0
    %229 = vmatpush1.msra.mxu0 0.0
    %230 = vmatprep.subr.mxu0 0.0
    %231 = vmatpush1.msra.mxu0 0.0
    %232 = vmatprep.subr.mxu0 0.0
    %233 = vmatpush1.msra.mxu0 0.0
    %234 = vmatprep.subr.mxu0 0.0
    %235 = vmatpush1.msra.mxu0 0.0
    %236 = vmatprep.mubr.f32.mxu0 0.0
    %237 = vmatmul.mubr.f32.gmra.mrb[0].mxu0 %v148
    %v238 = vpop.f32.mrb[0].mxu0
    %v239 = vadd.f32 %v170, %v238
    %v240 = vpop.f32.mrb[0].mxu0
    %241 = vdwg.mxu0
    %242 = vst [vmem:[#allocation8] sm:$0xff] %v239
    // Predicated region
    $region34: #{tpu_custom_call.1} parent=1 // pred_check
      _
    $region35: #{tpu_custom_call.1} parent=1 // pred_check_branch
      %244 = sbr.rel (0) target = $region37
    $region36: #{tpu_custom_call.1} parent=1 // pred_region
      %s246 = ssub.s32 128, 128
      %247 = vsyncadd [#allocation4], %s246
      %s249 = sshll.u32 [#allocation8], 4
      %s250 = int_to_ptr.vmem [resolvable:$true] %s249
      %252 = dma.vmem_to_hbm [thread:$0]  %s250, 128, %s5, [#allocation4]
    $region37: #{tpu_custom_call.1} parent=1 // pred_fallthru
      _
    // Predicated region
    $region38: #{tpu_custom_call.1} parent=1 // pred_check
      _
    $region39: #{tpu_custom_call.1} parent=1 // pred_check_branch
      %254 = sbr.rel (0) target = $region41
    $region40: #{tpu_custom_call.1} parent=1 // pred_region
      %255 = dma.done [#allocation4], 128
    $region41: #{tpu_custom_call.1} parent=1 // pred_fallthru
      _
    %256 = vsyncpa [#allocation3], 1
    %257 = vsyncpa [#allocation6], 1
    %258 = vsyncpa [#allocation4], 1

</llo_original>
